<compile_context>
chip_gen: v5e
topology: v5e:2x2
jax: 0.10.0
libtpu: 0.0.40
codegen_flags: <defaults>
</compile_context>

<pallas_src>
import functools
import math

import jax
import jax.numpy as jnp
from jax.experimental import pallas as pl
from jax.experimental.pallas import tpu as pltpu


# ----------------------------------------------------------------------------
# Small helpers
# ----------------------------------------------------------------------------
def _round_up(x, m):
    return (x + m - 1) // m * m


def _vmem_capacity_bytes():
    # Generation-aware physical VMEM (128 MiB v5e/v6e, 64 MiB per-TC v7x).
    try:
        return int(pltpu.get_tpu_info().vmem_capacity_bytes)
    except Exception:
        return 64 << 20


def _vmem_limit(footprint_bytes, capacity):
    # Scoped-VMEM limit sized from the actual tile set with headroom (v5e's
    # 16 MiB default would otherwise reject the chosen tiles), capped below
    # the physical capacity.
    return int(min(max(footprint_bytes + (8 << 20), 32 << 20), int(capacity * 0.9)))


# ----------------------------------------------------------------------------
# Kernel 1: conv1 as im2col matmul + bias + ReLU  (bf16 in, f32 acc, bf16 out)
# ----------------------------------------------------------------------------
def _matmul_bias_relu_kernel(x_ref, w_ref, b_ref, o_ref):
    # x: (TM, K) bf16 pipelined, w: (K, N) bf16 resident, b: (1, N) f32 resident.
    acc = jnp.dot(x_ref[...], w_ref[...], preferred_element_type=jnp.float32)
    o_ref[...] = jnp.maximum(acc + b_ref[...], 0.0).astype(o_ref.dtype)


def _conv1_matmul(x2d, w, b, out_dtype=jnp.bfloat16):
    """relu(x2d @ w + b).  x2d: (M8, K) bf16, w: (K, N) bf16, b: (1, N) f32."""
    m8, k = x2d.shape
    n = w.shape[1]
    cap = _vmem_capacity_bytes()

    # Per-row VMEM footprint (lane-padded) for the pipelined in/out tiles.
    in_bpr = _round_up(k, 128) * x2d.dtype.itemsize
    out_bpr = n * jnp.dtype(out_dtype).itemsize
    resident = 2 * (_round_up(k, 16) * n * w.dtype.itemsize + n * 4)  # 2x w + bias
    budget = int(cap * 0.4)
    tm = (budget - resident) // (2 * (in_bpr + out_bpr))
    tm = max(8, min(tm, 8192))
    # Guarantee >= 2 grid steps so the "parallel" M axis can span both
    # TensorCores on v7x; v5e/v6e are unaffected.
    tm = min(tm, max(8, _round_up(pl.cdiv(m8, 2), 8)))
    tm = max(8, (tm // 8) * 8)
    grid_m = pl.cdiv(m8, tm)                      # ragged last tile is masked
    footprint = 2 * tm * (in_bpr + out_bpr) + resident

    return pl.pallas_call(
        _matmul_bias_relu_kernel,
        out_shape=jax.ShapeDtypeStruct((m8, n), out_dtype),
        grid_spec=pl.GridSpec(
            grid=(grid_m,),
            in_specs=[
                pl.BlockSpec((tm, k), lambda i: (i, 0)),    # pipelined activations
                pl.BlockSpec((k, n), lambda i: (0, 0)),     # resident weight
                pl.BlockSpec((1, n), lambda i: (0, 0)),     # resident bias
            ],
            out_specs=pl.BlockSpec((tm, n), lambda i: (i, 0)),
        ),
        compiler_params=pltpu.CompilerParams(
            dimension_semantics=("parallel",),
            vmem_limit_bytes=_vmem_limit(footprint, cap),
        ),
    )(x2d, w, b)


# ----------------------------------------------------------------------------
# Kernel 2: fused conv2 (stride 3, 5x5) + ReLU + Linear + xscale + PE
# ----------------------------------------------------------------------------
def _conv2_linear_pe_kernel(h1ph_ref, w2_ref, b2_ref, w3_ref, b3_ref, pe_ref,
                            o_ref, *, t2, f2, xscale):
    # h1ph: (9, F2+1, T2+1, Cp) bf16 — stride-3 phase decomposition of the
    # conv1 output for one batch element.  conv2 tap (kt, kf) at output column
    # f is the contiguous slice h1ph[(kt%3)*3 + kf%3, f + kf//3, kt//3:kt//3+T2, :].
    cdt = h1ph_ref.dtype
    y = jnp.zeros(o_ref.shape, jnp.float32)
    for f in range(f2):
        acc = jnp.zeros(o_ref.shape, jnp.float32)
        for kt in range(5):
            for kf in range(5):
                ph = (kt % 3) * 3 + (kf % 3)
                tap = h1ph_ref[ph, f + kf // 3, kt // 3:kt // 3 + t2, :]  # (T2, Cp)
                acc += jnp.dot(tap, w2_ref[kt * 5 + kf],
                               preferred_element_type=jnp.float32)
        h2f = jnp.maximum(acc + b2_ref[...], 0.0).astype(cdt)   # ReLU, back to bf16
        y += jnp.dot(h2f, w3_ref[f], preferred_element_type=jnp.float32)
    o_ref[...] = ((y + b3_ref[...]) * xscale + pe_ref[...]).astype(o_ref.dtype)


def _conv2_linear_pe(h1ph, w2, b2, w3, b3, pe, *, xscale, out_dtype):
    bsz, nine, f2p, t2p, cp = h1ph.shape
    t2, f2 = t2p - 1, f2p - 1
    cap = _vmem_capacity_bytes()
    per_in = nine * f2p * t2p * cp * h1ph.dtype.itemsize
    footprint = 2 * (per_in
                     + w2.size * w2.dtype.itemsize
                     + w3.size * w3.dtype.itemsize
                     + (b2.size + b3.size + pe.size) * 4
                     + t2 * cp * jnp.dtype(out_dtype).itemsize) + (4 << 20)

    kernel = functools.partial(_conv2_linear_pe_kernel, t2=t2, f2=f2,
                               xscale=float(xscale))
    return pl.pallas_call(
        kernel,
        out_shape=jax.ShapeDtypeStruct((bsz, t2, cp), out_dtype),
        grid_spec=pl.GridSpec(
            grid=(bsz,),
            in_specs=[
                pl.BlockSpec((None, 9, f2p, t2p, cp), lambda b: (b, 0, 0, 0, 0)),
                pl.BlockSpec((25, cp, cp), lambda b: (0, 0, 0)),  # conv2 weight (resident)
                pl.BlockSpec((1, cp), lambda b: (0, 0)),          # conv2 bias
                pl.BlockSpec((f2, cp, cp), lambda b: (0, 0, 0)),  # linear weight (resident)
                pl.BlockSpec((1, cp), lambda b: (0, 0)),          # linear bias
                pl.BlockSpec((t2, cp), lambda b: (0, 0)),         # PE table (resident)
            ],
            out_specs=pl.BlockSpec((None, t2, cp), lambda b: (b, 0, 0)),
        ),
        compiler_params=pltpu.CompilerParams(
            dimension_semantics=("parallel",),
            vmem_limit_bytes=_vmem_limit(footprint, cap),
        ),
    )(h1ph, w2, b2, w3, b3, pe)


# ----------------------------------------------------------------------------
# One-time parameter re-layout (outside the forward path)
# ----------------------------------------------------------------------------
def prepare_params(raw, idim):
    """Re-layout PyTorch-style parameters for the Pallas kernels.

    raw: conv1_w (O,1,3,3), conv1_b (O,), conv2_w (O,O,5,5), conv2_b (O,),
         lin_w (O, O*F2) [torch Linear (out,in)], lin_b (O,)
    """
    odim = raw["conv1_w"].shape[0]
    cp = _round_up(odim, 128)                  # lane-dense channel width
    f1 = (idim - 3) // 2 + 1
    f2 = (f1 - 5) // 3 + 1                     # == ((idim - 1)//2 - 2)//3
    bf = jnp.bfloat16

    w1 = jnp.transpose(raw["conv1_w"], (2, 3, 1, 0)).reshape(9, odim)
    w1p = jnp.zeros((9, cp), bf).at[:, :odim].set(w1.astype(bf))
    b1p = jnp.zeros((1, cp), jnp.float32).at[:, :odim].set(raw["conv1_b"])

    w2 = jnp.transpose(raw["conv2_w"], (2, 3, 1, 0)).reshape(25, odim, odim)
    w2p = jnp.zeros((25, cp, cp), bf).at[:, :odim, :odim].set(w2.astype(bf))
    b2p = jnp.zeros((1, cp), jnp.float32).at[:, :odim].set(raw["conv2_b"])

    # Torch's transpose(1,2).view makes the Linear input index c*F2 + f.  Store
    # the weight as per-frequency (F2, Cp, Cp) blocks so the fused kernel never
    # reshapes / transposes h2 in VMEM.
    w3 = jnp.transpose(raw["lin_w"].reshape(odim, odim, f2), (2, 1, 0))  # (F2, C, O)
    w3p = jnp.zeros((f2, cp, cp), bf).at[:, :odim, :odim].set(w3.astype(bf))
    b3p = jnp.zeros((1, cp), jnp.float32).at[:, :odim].set(raw["lin_b"])

    return {"w1p": w1p, "b1p": b1p, "w2p": w2p, "b2p": b2p,
            "w3p": w3p, "b3p": b3p, "odim": odim, "cp": cp, "f2": f2}


def sinusoidal_pe(length, d_model, dtype=jnp.float32):
    """ESPnet PositionalEncoding table (length, d_model)."""
    position = jnp.arange(length, dtype=jnp.float32)[:, None]
    div_term = jnp.exp(
        jnp.arange(0, d_model, 2, dtype=jnp.float32) * -(math.log(10000.0) / d_model)
    )
    pe = jnp.zeros((length, d_model), dtype=jnp.float32)
    pe = pe.at[:, 0::2].set(jnp.sin(position * div_term))
    pe = pe.at[:, 1::2].set(jnp.cos(position * div_term))
    return pe.astype(dtype)


# ----------------------------------------------------------------------------
# Forward pass (matches Conv2dSubsampling6.forward, eval mode)
# ----------------------------------------------------------------------------
def conv2d_subsampling6_forward(x, x_mask, params):
    """x: (B, T, idim) float32, x_mask: (B, 1, T) bool or None."""
    b, t, f = x.shape
    odim, cp = params["odim"], params["cp"]
    t1, f1 = (t - 3) // 2 + 1, (f - 3) // 2 + 1
    t2, f2 = (t1 - 5) // 3 + 1, (f1 - 5) // 3 + 1
    assert f2 == params["f2"], (f2, params["f2"])

    # ---- Conv2d(1, odim, 3, stride=2) + ReLU : im2col (plumbing) -> MXU -----
    p1 = jnp.stack(
        [x[:, kt:kt + 2 * t1 - 1:2, kf:kf + 2 * f1 - 1:2]
         for kt in range(3) for kf in range(3)],
        axis=-1,
    ).astype(jnp.bfloat16)                               # (B, T1, F1, 9), order (kt, kf)
    m1 = b * t1 * f1
    m8 = _round_up(m1, 8)                                # pad rows to 8 only
    p1_2d = p1.reshape(m1, 9)
    if m8 != m1:
        p1_2d = jnp.pad(p1_2d, ((0, m8 - m1), (0, 0)))
    h1 = _conv1_matmul(p1_2d, params["w1p"], params["b1p"])[:m1]
    h1 = h1.reshape(b, t1, f1, cp)                       # bf16, channels-last, lane-padded

    # ---- phase-decompose h1 for the stride-3 conv2 (1x relayout, no 25x) ----
    t2p, f2p = t2 + 1, f2 + 1
    phases = []
    for pt in range(3):
        for pf in range(3):
            sl = h1[:, pt:pt + 3 * t2p:3, pf:pf + 3 * f2p:3, :]
            sl = jnp.pad(sl, ((0, 0), (0, t2p - sl.shape[1]),
                              (0, f2p - sl.shape[2]), (0, 0)))
            phases.append(jnp.transpose(sl, (0, 2, 1, 3)))   # (B, F2+1, T2+1, Cp)
    h1ph = jnp.stack(phases, axis=1)                     # (B, 9, F2+1, T2+1, Cp) bf16

    # ---- Conv2d(odim, odim, 5, stride=3) + ReLU + Linear + xscale + PE ------
    pe = jnp.zeros((t2, cp), jnp.float32).at[:, :odim].set(sinusoidal_pe(t2, odim))
    y = _conv2_linear_pe(h1ph, params["w2p"], params["b2p"],
                         params["w3p"], params["b3p"], pe,
                         xscale=math.sqrt(odim), out_dtype=x.dtype)
    y = y[:, :, :odim]

    if x_mask is None:
        return y, None
    return y, x_mask[:, :, :-2:2][:, :, :-4:3]


# ----------------------------------------------------------------------------
# Pure-JAX reference (lax convs) for correctness checking
# ----------------------------------------------------------------------------
def _reference_forward(x, x_mask, raw, odim):
    xi = x[:, None, :, :]                                # (B,1,T,F)
    h = jax.lax.conv_general_dilated(
        xi, raw["conv1_w"], window_strides=(2, 2), padding="VALID",
        dimension_numbers=("NCHW", "OIHW", "NCHW"))
    h = jax.nn.relu(h + raw["conv1_b"][None, :, None, None])
    h = jax.lax.conv_general_dilated(
        h, raw["conv2_w"], window_strides=(3, 3), padding="VALID",
        dimension_numbers=("NCHW", "OIHW", "NCHW"))
    h = jax.nn.relu(h + raw["conv2_b"][None, :, None, None])
    bb, c, t2, f2 = h.shape
    hf = jnp.transpose(h, (0, 2, 1, 3)).reshape(bb, t2, c * f2)
    y = hf @ raw["lin_w"].T + raw["lin_b"]
    y = y * math.sqrt(odim) + sinusoidal_pe(t2, odim)[None]
    mask = None if x_mask is None else x_mask[:, :, :-2:2][:, :, :-4:3]
    return y, mask


if __name__ == "__main__":
    # Small shapes consistent with the module: x = (batch, time, idim)
    batch, time, idim, odim = 2, 32, 32, 32

    key = jax.random.PRNGKey(0)
    k = jax.random.split(key, 7)
    x = jax.random.normal(k[0], (batch, time, idim), dtype=jnp.float32)
    x_mask = jnp.ones((batch, 1, time), dtype=bool)

    f2 = ((idim - 1) // 2 - 2) // 3   # Linear in-features / odim, per the module

    def uinit(kk, shape, fan_in):
        bound = 1.0 / math.sqrt(fan_in)
        return jax.random.uniform(kk, shape, minval=-bound, maxval=bound,
                                  dtype=jnp.float32)

    raw = {
        "conv1_w": uinit(k[1], (odim, 1, 3, 3), 9),
        "conv1_b": uinit(k[2], (odim,), 9),
        "conv2_w": uinit(k[3], (odim, odim, 5, 5), odim * 25),
        "conv2_b": uinit(k[4], (odim,), odim * 25),
        "lin_w":   uinit(k[5], (odim, odim * f2), odim * f2),
        "lin_b":   uinit(k[6], (odim,), odim * f2),
    }
    params = prepare_params(raw, idim)

    y, mask = conv2d_subsampling6_forward(x, x_mask, params)
    y = jax.block_until_ready(y)

    y_ref, mask_ref = _reference_forward(x, x_mask, raw, odim)
    assert y.shape == y_ref.shape, (y.shape, y_ref.shape)
    assert mask.shape == mask_ref.shape, (mask.shape, mask_ref.shape)
    assert bool(jnp.array_equal(mask, mask_ref))
    # bf16 MXU pass -> loose elementwise tolerance; the aggregate (mean) check
    # is tight enough to catch any layout / tap-ordering bug (which would be
    # O(0.3-1) off on most elements).
    err = jnp.abs(y - y_ref)
    max_err = float(jnp.max(err))
    mean_err = float(jnp.mean(err))
    assert max_err < 1e-1, ("max_err", max_err)
    assert mean_err < 2e-2, ("mean_err", mean_err)

    print("KERNEL_OK")
</pallas_src>

<mosaic_0001>
module attributes {stable_mosaic.version = 11 : i64} {
  func.func @_matmul_bias_relu_kernel(%arg0: i32, %arg1: memref<232x9xbf16, #tpu.memory_space<vmem>>, %arg2: memref<9x128xbf16, #tpu.memory_space<vmem>>, %arg3: memref<1x128xf32, #tpu.memory_space<vmem>>, %arg4: memref<232x128xbf16, #tpu.memory_space<vmem>>) attributes {dimension_semantics = [#tpu.dimension_semantics<parallel>], iteration_bounds = array<i64: 2>, scalar_prefetch = 0 : i64, scratch_operands = 0 : i64, tpu.core_type = #tpu.core_type<tc>, window_params = [{transform_indices = @transform_0, window_bounds = array<i64: 232, 9>}, {pipeline_mode = #tpu.pipeline_mode<synchronous>, transform_indices = @transform_1, window_bounds = array<i64: 9, 128>}, {pipeline_mode = #tpu.pipeline_mode<synchronous>, transform_indices = @transform_2, window_bounds = array<i64: 1, 128>}, {transform_indices = @transform_3, window_bounds = array<i64: 232, 128>}]} {
    %c0 = arith.constant 0 : index
    %c0_0 = arith.constant 0 : index
    %0 = vector.load %arg1[%c0, %c0_0] : memref<232x9xbf16, #tpu.memory_space<vmem>>, vector<232x9xbf16>
    %c0_1 = arith.constant 0 : index
    %c0_2 = arith.constant 0 : index
    %1 = vector.load %arg2[%c0_1, %c0_2] : memref<9x128xbf16, #tpu.memory_space<vmem>>, vector<9x128xbf16>
    %cst = arith.constant dense<0.000000e+00> : vector<232x128xf32>
    %2 = tpu.matmul %0, %1, %cst {dimension_numbers = #tpu.dot_dimension_numbers<[1], [0], [0], [1], [0, 0, 1, 1], [], []>} : vector<232x9xbf16>, vector<9x128xbf16>, vector<232x128xf32> -> vector<232x128xf32>
    %c0_3 = arith.constant 0 : index
    %c0_4 = arith.constant 0 : index
    %3 = vector.load %arg3[%c0_3, %c0_4] : memref<1x128xf32, #tpu.memory_space<vmem>>, vector<1x128xf32>
    %4 = vector.broadcast %3 : vector<1x128xf32> to vector<232x128xf32>
    %5 = arith.addf %2, %4 : vector<232x128xf32>
    %cst_5 = arith.constant 0.000000e+00 : f32
    %6 = vector.broadcast %cst_5 : f32 to vector<232x128xf32>
    %7 = arith.maximumf %5, %6 : vector<232x128xf32>
    %8 = arith.truncf %7 : vector<232x128xf32> to vector<232x128xbf16>
    %c0_6 = arith.constant 0 : index
    %c0_7 = arith.constant 0 : index
    %9 = vector.load %arg4[%c0_6, %c0_7] : memref<232x128xbf16, #tpu.memory_space<vmem>>, vector<232x128xbf16>
    tpu.vector_store %arg4[%c0_6, %c0_7], %8 {strides = array<i32>} : memref<232x128xbf16, #tpu.memory_space<vmem>>, vector<232x128xbf16>,
    return
  }
  func.func @transform_0(%arg0: i32) -> (i32, i32) {
    %c0_i32 = arith.constant 0 : i32
    %c0_i32_0 = arith.constant 0 : i32
    return %arg0, %c0_i32 : i32, i32
  }
  func.func @transform_1(%arg0: i32) -> (i32, i32) {
    %c0_i32 = arith.constant 0 : i32
    %c0_i32_0 = arith.constant 0 : i32
    %c0_i32_1 = arith.constant 0 : i32
    return %c0_i32, %c0_i32_0 : i32, i32
  }
  func.func @transform_2(%arg0: i32) -> (i32, i32) {
    %c0_i32 = arith.constant 0 : i32
    %c0_i32_0 = arith.constant 0 : i32
    %c0_i32_1 = arith.constant 0 : i32
    return %c0_i32, %c0_i32_0 : i32, i32
  }
  func.func @transform_3(%arg0: i32) -> (i32, i32) {
    %c0_i32 = arith.constant 0 : i32
    %c0_i32_0 = arith.constant 0 : i32
    return %arg0, %c0_i32 : i32, i32
  }
}

</mosaic_0001>

<llo_original>
// kernel: tpu_custom_call.1
$region0: #{tpu_custom_call.1}
  #allocation0 [shape = 'u32[]', space=smem, size = 0x4, offset = 0x4, fixed_abs, tag = 'smem constant byte address 0x4 - core index']
  #allocation1 [shape = 'u32[72,128]{1,0:T(1,128)}', space=vmem, size = 0x9000, scoped, tag = 'internal scratch']
  %s0 = inlined_call_operand.vmem [shape: bf16[456,9], index: 0, kind: input, shape index: {}]
  %s1 = inlined_call_operand.vmem [shape: bf16[9,128], index: 1, kind: input, shape index: {}]
  %s2 = inlined_call_operand.vmem [shape: f32[1,128], index: 2, kind: input, shape index: {}]
  %s3 = inlined_call_operand.hbm [shape: bf16[456,128], index: 3, kind: output, shape index: {}]
  %s4 = sld [smem:[#allocation0]]
  $region45: #{tpu_custom_call.1} parent=0
    _
  %s6 = ssub.s32 1, %s4
  %s7 = scalar_select 0, %s6, %s4
  $region1: #{tpu_custom_call.1} parent=0
    #allocation2 [shape = 'u8[118784]{0}', space=vmem, size = 0x1d000, scoped, tag = 'output window, operand 0']
    #allocation3 [shape = 's32[2]{0}', space=sflag, size = 0x8, scoped, tag = 'scoped memory for tpu_custom_call.1']
    %8 = vsyncpa [#allocation3], 0
    %s9 = scalar_lea.sflag [#allocation3], 1
    %10 = vsyncpa %s9, 0
    loop: start=0, step=1, limit=4
    $region2: #{tpu_custom_call.1} parent=1 // loop_pre_header
      _
    $region3: #{tpu_custom_call.1} parent=1 // loop_header
      %s12 = sphi 0, %s16
      %p13 = scmp.ge.s32.totalorder %s12, 4
      %s22 = sphi 0, %s24
      %s25 = sphi 0, %s22
      %s26 = sphi 0, %s25
      %s42 = sphi 0, %s26
      %s46 = sphi 0, %s46
      %s48 = sphi 0, %s46
      %s49 = sphi 0, %s48
      %s63 = sphi 0, %s49
      %s67 = sphi 0, %s67
      %s69 = sphi 0, %s67
      %s70 = sphi 0, %s69
      %s84 = sphi 0, %s70
      %s90 = sphi 0, %s92
      %s93 = sphi 0, %s90
      %s94 = sphi 0, %s93
      %s110 = sphi 0, %s94
    $region4: #{tpu_custom_call.1} parent=1 // loop_header_branch
      %15 = sbr.rel (%p13) target = $region8
    $region5: #{tpu_custom_call.1} parent=1 // loop_body
      %s17 = ssub.s32 %s12, 1
      %s18 = ssub.s32 %s12, 2
      %s19 = sadd.s32 %s12, 1
      %s20 = ssub.s32 %s12, %s19
      %p21 = scmp.eq.s32.totalorder %s20, 0
      %s23 = sadd.s32 %s22, 1
      %s24 = scalar_select %p21, %s22, %s23
      %p27 = pneg %p21
      %p28 = scmp.eq.s32.totalorder %s12, 1
      %p29 = por %p27, %p28
      %p30 = scmp.ne.s32.totalorder %s22, %s25
      %p31 = scmp.eq.s32.totalorder %s12, 0
      %p32 = por %p30, %p31
      %p33 = scmp.ne.s32.totalorder %s22, %s25
      %p34 = scmp.eq.s32.totalorder %s17, 1
      %p35 = por %p33, %p34
      %p36 = scmp.ne.s32.totalorder %s25, %s26
      %p37 = scmp.eq.s32.totalorder %s17, 0
      %p38 = por %p36, %p37
      %p39 = scmp.ne.s32.totalorder %s25, %s26
      %p40 = scmp.eq.s32.totalorder %s18, 1
      %p41 = por %p39, %p40
      %p43 = scmp.ne.s32.totalorder %s26, %s42
      %p44 = scmp.eq.s32.totalorder %s18, 0
      %p45 = por %p43, %p44
      %s47 = sadd.s32 %s46, 1
      %p50 = scmp.eq.s32.totalorder %s12, 1
      %p51 = scmp.ne.s32.totalorder %s46, %s48
      %p52 = scmp.eq.s32.totalorder %s12, 0
      %p53 = por %p51, %p52
      %p54 = scmp.ne.s32.totalorder %s46, %s48
      %p55 = scmp.eq.s32.totalorder %s17, 1
      %p56 = por %p54, %p55
      %p57 = scmp.ne.s32.totalorder %s48, %s49
      %p58 = scmp.eq.s32.totalorder %s17, 0
      %p59 = por %p57, %p58
      %p60 = scmp.ne.s32.totalorder %s48, %s49
      %p61 = scmp.eq.s32.totalorder %s18, 1
      %p62 = por %p60, %p61
      %p64 = scmp.ne.s32.totalorder %s49, %s63
      %p65 = scmp.eq.s32.totalorder %s18, 0
      %p66 = por %p64, %p65
      %s68 = sadd.s32 %s67, 1
      %p71 = scmp.eq.s32.totalorder %s12, 1
      %p72 = scmp.ne.s32.totalorder %s67, %s69
      %p73 = scmp.eq.s32.totalorder %s12, 0
      %p74 = por %p72, %p73
      %p75 = scmp.ne.s32.totalorder %s67, %s69
      %p76 = scmp.eq.s32.totalorder %s17, 1
      %p77 = por %p75, %p76
      %p78 = scmp.ne.s32.totalorder %s69, %s70
      %p79 = scmp.eq.s32.totalorder %s17, 0
      %p80 = por %p78, %p79
      %p81 = scmp.ne.s32.totalorder %s69, %s70
      %p82 = scmp.eq.s32.totalorder %s18, 1
      %p83 = por %p81, %p82
      %p85 = scmp.ne.s32.totalorder %s70, %s84
      %p86 = scmp.eq.s32.totalorder %s18, 0
      %p87 = por %p85, %p86
      %s88 = ssub.s32 %s12, %s19
      %p89 = scmp.eq.s32.totalorder %s88, 0
      %s91 = sadd.s32 %s90, 1
      %s92 = scalar_select %p89, %s90, %s91
      %p95 = pneg %p89
      %p96 = scmp.eq.s32.totalorder %s12, 1
      %p97 = por %p95, %p96
      %p98 = scmp.ne.s32.totalorder %s90, %s93
      %p99 = scmp.eq.s32.totalorder %s12, 0
      %p100 = por %p98, %p99
      %p101 = scmp.ne.s32.totalorder %s90, %s93
      %p102 = scmp.eq.s32.totalorder %s17, 1
      %p103 = por %p101, %p102
      %p104 = scmp.ne.s32.totalorder %s93, %s94
      %p105 = scmp.eq.s32.totalorder %s17, 0
      %p106 = por %p104, %p105
      %p107 = scmp.ne.s32.totalorder %s93, %s94
      %p108 = scmp.eq.s32.totalorder %s18, 1
      %p109 = por %p107, %p108
      %p111 = scmp.ne.s32.totalorder %s94, %s110
      %p112 = scmp.eq.s32.totalorder %s18, 0
      %p113 = por %p111, %p112
      %p114 = scmp.le.s32.totalorder 1, %s12
      %p115 = scmp.lt.s32.totalorder %s12, 3
      %p116 = pnand %p114, %p115
      %p117 = pneg %p116
      // Predicated region
      $region9: #{tpu_custom_call.1} parent=5 // pred_check
        _
      $region10: #{tpu_custom_call.1} parent=5 // pred_check_branch
        %119 = sbr.rel (%p116) target = $region12
      $region11: #{tpu_custom_call.1} parent=5 // pred_region
        %s120 = ssub.s32 %s12, 1
        // Predicated region
        $region13: #{tpu_custom_call.1} parent=11 // pred_check
          %p121 = pneg %p59
        $region14: #{tpu_custom_call.1} parent=11 // pred_check_branch
          %123 = sbr.rel (%p121) target = $region16
        $region15: #{tpu_custom_call.1} parent=11 // pred_region
          _
        $region16: #{tpu_custom_call.1} parent=11 // pred_fallthru
          _
        // Predicated region
        $region17: #{tpu_custom_call.1} parent=11 // pred_check
          %p124 = pneg %p80
        $region18: #{tpu_custom_call.1} parent=11 // pred_check_branch
          %126 = sbr.rel (%p124) target = $region20
        $region19: #{tpu_custom_call.1} parent=11 // pred_region
          _
        $region20: #{tpu_custom_call.1} parent=11 // pred_fallthru
          _
      $region12: #{tpu_custom_call.1} parent=5 // pred_fallthru
        _
      %p127 = scmp.lt.s32.totalorder %s12, 2
      // Predicated region
      $region21: #{tpu_custom_call.1} parent=5 // pred_check
        %p128 = pneg %p127
      $region22: #{tpu_custom_call.1} parent=5 // pred_check_branch
        %130 = sbr.rel (%p128) target = $region24
      $region23: #{tpu_custom_call.1} parent=5 // pred_region
        // Predicated region
        $region25: #{tpu_custom_call.1} parent=23 // pred_check
          %p131 = pneg %p32
        $region26: #{tpu_custom_call.1} parent=23 // pred_check_branch
          %133 = sbr.rel (%p131) target = $region28
        $region27: #{tpu_custom_call.1} parent=23 // pred_region
          %s134 = smul.u32 29, %s12
          %s135 = ssub.s32 57, %s134
          %p136 = scmp.lt.s32.totalorder %s135, 29
          %s137 = scalar_select %p136, %s135, 29
          %s138 = smul.u32 4, %s137
          %p139 = scmp.lt.s32.totalorder %s134, 56
          %s140 = scalar_select %p139, %s134, 56
          %s141 = smul.addr %s140, 4
          %s142 = scalar_lea.vmem %s0, %s141
          %s143 = smul.u32 29, %s12
          %s144 = ssub.s32 57, %s143
          %p145 = scmp.lt.s32.totalorder %s144, 29
          %s146 = scalar_select %p145, %s144, 29
          %s147 = smul.u32 4, %s146
        $region28: #{tpu_custom_call.1} parent=23 // pred_fallthru
          _
      $region24: #{tpu_custom_call.1} parent=5 // pred_fallthru
        _
      %p148 = scmp.le.s32.totalorder 1, %s12
      %p149 = scmp.lt.s32.totalorder %s12, 3
      %p150 = pnand %p148, %p149
      %p151 = pneg %p150
      // Predicated region
      $region29: #{tpu_custom_call.1} parent=5 // pred_check
        _
      $region30: #{tpu_custom_call.1} parent=5 // pred_check_branch
        %153 = sbr.rel (%p150) target = $region32
      $region31: #{tpu_custom_call.1} parent=5 // pred_region
        %s154 = ssub.s32 %s12, 1
        %s155 = smul.u32 29, %s17
        %s156 = ssub.s32 57, %s155
        %p157 = scmp.lt.s32.totalorder %s156, 29
        %s158 = scalar_select %p157, %s156, 29
        %s159 = smul.u32 4, %s158
        %p160 = scmp.lt.s32.totalorder %s155, 56
        %s161 = scalar_select %p160, %s155, 56
        %s162 = smul.addr %s161, 4
        %s163 = scalar_lea.vmem %s0, %s162
        %p164 = pneg %p38
        %p165 = pneg %p35
        %p166 = pneg %p59
        %p167 = pneg %p56
        %p168 = pneg %p80
        %p169 = pneg %p77
        %p170 = pneg %p106
        %p171 = pneg %p103
        %s172 = sand.u32 %s93, 1
        %s173 = scalar_lea.sflag [#allocation3], %s172
        %s174 = sand.u32 %s93, 1
        %s175 = smul.addr %s174, 116
        %s176 = scalar_lea.vmem [#allocation2], %s175
        %s177 = smul.u32 29, %s17
        %s178 = ssub.s32 57, %s177
        %p179 = scmp.lt.s32.totalorder %s178, 29
        %s180 = scalar_select %p179, %s178, 29
        %s181 = smul.u32 4, %s180
        %p182 = scmp.lt.s32.totalorder %s177, 56
        %s183 = scalar_select %p182, %s177, 56
        %s184 = smul.addr %s183, 4
        %s185 = scalar_lea.vmem %s0, %s184
        %s186 = smul.u32 29, %s17
        %s187 = ssub.s32 57, %s186
        %p188 = scmp.lt.s32.totalorder %s187, 29
        %s189 = scalar_select %p188, %s187, 29
        %s190 = smul.u32 4, %s189
        %s191 = smul.u32 29, %s17
        %s192 = ssub.s32 57, %s191
        %p193 = scmp.lt.s32.totalorder %s192, 29
        %s194 = scalar_select %p193, %s192, 29
        %s195 = smul.u32 4, %s194
        %v197 = vld [vmem:[%s185] sm:$0xf]
        %v198 = vld [vmem:[%s185 + $0x4] sm:$0xf]
        %v199 = vld [vmem:[%s185 + $0x8] sm:$0xf]
        %v200 = vld [vmem:[%s185 + $0xc] sm:$0xf]
        %v201 = vld [vmem:[%s185 + $0x10] sm:$0xf]
        %v202 = vld [vmem:[%s185 + $0x14] sm:$0xf]
        %v203 = vld [vmem:[%s185 + $0x18] sm:$0xf]
        %v204 = vld [vmem:[%s185 + $0x1c] sm:$0xf]
        %v205 = vld [vmem:[%s185 + $0x20] sm:$0xf]
        %v206 = vld [vmem:[%s185 + $0x24] sm:$0xf]
        %v207 = vld [vmem:[%s185 + $0x28] sm:$0xf]
        %v208 = vld [vmem:[%s185 + $0x2c] sm:$0xf]
        %v209 = vld [vmem:[%s185 + $0x30] sm:$0xf]
        %v210 = vld [vmem:[%s185 + $0x34] sm:$0xf]
        %v211 = vld [vmem:[%s185 + $0x38] sm:$0xf]
        %v212 = vld [vmem:[%s185 + $0x3c] sm:$0xf]
        %v213 = vld [vmem:[%s185 + $0x40] sm:$0xf]
        %v214 = vld [vmem:[%s185 + $0x44] sm:$0xf]
        %v215 = vld [vmem:[%s185 + $0x48] sm:$0xf]
        %v216 = vld [vmem:[%s185 + $0x4c] sm:$0xf]
        %v217 = vld [vmem:[%s185 + $0x50] sm:$0xf]
        %v218 = vld [vmem:[%s185 + $0x54] sm:$0xf]
        %v219 = vld [vmem:[%s185 + $0x58] sm:$0xf]
        %v220 = vld [vmem:[%s185 + $0x5c] sm:$0xf]
        %v221 = vld [vmem:[%s185 + $0x60] sm:$0xf]
        %v222 = vld [vmem:[%s185 + $0x64] sm:$0xf]
        %v223 = vld [vmem:[%s185 + $0x68] sm:$0xf]
        %v224 = vld [vmem:[%s185 + $0x6c] sm:$0xf]
        %v225 = vld [vmem:[%s185 + $0x70] sm:$0xf]
        %v226 = vld [vmem:[%s1] sm:$0xf]
        %v227 = vld [vmem:[%s1 + $0x4] sm:$0x1]
        %v228 = vld [vmem:[%s2] sm:$0x1]
        %v230 = vperm.slane %v228, 0
        %v261 = vunpack.c.l.b16 %v197
        %v262 = vunpack.c.l.b16 %v198
        %v263 = vunpack.c.l.b16 %v199
        %v264 = vunpack.c.l.b16 %v200
        %v265 = vunpack.c.l.b16 %v201
        %v266 = vunpack.c.l.b16 %v202
        %v267 = vunpack.c.l.b16 %v203
        %v268 = vunpack.c.l.b16 %v204
        %v269 = vunpack.c.l.b16 %v205
        %v270 = vunpack.c.l.b16 %v206
        %v271 = vunpack.c.l.b16 %v207
        %v272 = vunpack.c.l.b16 %v208
        %v273 = vunpack.c.l.b16 %v209
        %v274 = vunpack.c.l.b16 %v210
        %v275 = vunpack.c.l.b16 %v211
        %v276 = vunpack.c.l.b16 %v212
        %v277 = vunpack.c.l.b16 %v213
        %v278 = vunpack.c.l.b16 %v214
        %v279 = vunpack.c.l.b16 %v215
        %v280 = vunpack.c.l.b16 %v216
        %v281 = vunpack.c.l.b16 %v217
        %v282 = vunpack.c.l.b16 %v218
        %v283 = vunpack.c.l.b16 %v219
        %v284 = vunpack.c.l.b16 %v220
        %v285 = vunpack.c.l.b16 %v221
        %v286 = vunpack.c.l.b16 %v222
        %v287 = vunpack.c.l.b16 %v223
        %v288 = vunpack.c.l.b16 %v224
        %v289 = vunpack.c.l.b16 %v225
        %v290 = vpack.c.b16 %v262, %v261
        %v291 = vpack.c.b16 %v264, %v263
        %v292 = vpack.c.b16 %v266, %v265
        %v293 = vpack.c.b16 %v268, %v267
        %v294 = vpack.c.b16 %v270, %v269
        %v295 = vpack.c.b16 %v272, %v271
        %v296 = vpack.c.b16 %v274, %v273
        %v297 = vpack.c.b16 %v276, %v275
        %v298 = vpack.c.b16 %v278, %v277
        %v299 = vpack.c.b16 %v280, %v279
        %v300 = vpack.c.b16 %v282, %v281
        %v301 = vpack.c.b16 %v284, %v283
        %v302 = vpack.c.b16 %v286, %v285
        %v303 = vpack.c.b16 %v288, %v287
        %v304 = vpack.c.b16 %v289, %v289
        %v307 = vunpack.c.l.b16 %v226
        %v308 = vunpack.c.l.b16 %v227
        %v309 = vpack.c.b16 %v308, %v307
        %vm310 = vcmask 72704
        %v312 = vsel %vm310, %v290, 0
        %v315 = vsel %vm310, %v291, 0
        %v318 = vsel %vm310, %v292, 0
        %v321 = vsel %vm310, %v293, 0
        %v324 = vsel %vm310, %v294, 0
        %v327 = vsel %vm310, %v295, 0
        %v330 = vsel %vm310, %v296, 0
        %v333 = vsel %vm310, %v297, 0
        %v336 = vsel %vm310, %v298, 0
        %v339 = vsel %vm310, %v299, 0
        %v342 = vsel %vm310, %v300, 0
        %v345 = vsel %vm310, %v301, 0
        %v348 = vsel %vm310, %v302, 0
        %v351 = vsel %vm310, %v303, 0
        %v354 = vsel %vm310, %v304, 0
        %vm356 = vcmask 1043456
        %vm357 = vcmask 1044480
        %v358 = vsel %vm356, 4294967295, 65535
        %v359 = vsel %vm357, %v358, 0
        %v361 = vand.u32 %v309, %v359
        %363 = vmatpush.bf16.msra.mxu0 0
        %364 = vmatpush.bf16.msra.mxu0 0
        %365 = vmatpush.bf16.msra.mxu0 0
        %366 = vmatpush.bf16.msra.mxu0 0
        %367 = vmatpush.bf16.msra.mxu0 0
        %368 = vmatpush.bf16.msra.mxu0 0
        %369 = vmatpush.bf16.msra.mxu0 0
        %370 = vmatpush.bf16.msra.mxu0 %v361
        %371 = vmatmul.bf16.gmra.mxu0 %v312
        %v372 = vpop.f32.mrf.mxu0
        %v373 = vadd.f32 %v230, %v372
        %v374 = vpop.f32.mrf.mxu0
        %v375 = vadd.f32 %v230, %v374
        %376 = vmatmul.bf16.gmra.mxu0 %v315
        %v377 = vpop.f32.mrf.mxu0
        %v378 = vadd.f32 %v230, %v377
        %v379 = vpop.f32.mrf.mxu0
        %v380 = vadd.f32 %v230, %v379
        %381 = vmatmul.bf16.gmra.mxu0 %v318
        %v382 = vpop.f32.mrf.mxu0
        %v383 = vadd.f32 %v230, %v382
        %v384 = vpop.f32.mrf.mxu0
        %v385 = vadd.f32 %v230, %v384
        %386 = vmatmul.bf16.gmra.mxu0 %v321
        %v387 = vpop.f32.mrf.mxu0
        %v388 = vadd.f32 %v230, %v387
        %v389 = vpop.f32.mrf.mxu0
        %v390 = vadd.f32 %v230, %v389
        %391 = vmatmul.bf16.gmra.mxu0 %v324
        %v392 = vpop.f32.mrf.mxu0
        %v393 = vadd.f32 %v230, %v392
        %v394 = vpop.f32.mrf.mxu0
        %v395 = vadd.f32 %v230, %v394
        %396 = vmatmul.bf16.gmra.mxu0 %v327
        %v397 = vpop.f32.mrf.mxu0
        %v398 = vadd.f32 %v230, %v397
        %v399 = vpop.f32.mrf.mxu0
        %v400 = vadd.f32 %v230, %v399
        %401 = vmatmul.bf16.gmra.mxu0 %v330
        %v402 = vpop.f32.mrf.mxu0
        %v403 = vadd.f32 %v230, %v402
        %v404 = vpop.f32.mrf.mxu0
        %v405 = vadd.f32 %v230, %v404
        %406 = vmatmul.bf16.gmra.mxu0 %v333
        %v407 = vpop.f32.mrf.mxu0
        %v408 = vadd.f32 %v230, %v407
        %v409 = vpop.f32.mrf.mxu0
        %v410 = vadd.f32 %v230, %v409
        %411 = vmatmul.bf16.gmra.mxu0 %v336
        %v412 = vpop.f32.mrf.mxu0
        %v413 = vadd.f32 %v230, %v412
        %v414 = vpop.f32.mrf.mxu0
        %v415 = vadd.f32 %v230, %v414
        %416 = vmatmul.bf16.gmra.mxu0 %v339
        %v417 = vpop.f32.mrf.mxu0
        %v418 = vadd.f32 %v230, %v417
        %v419 = vpop.f32.mrf.mxu0
        %v420 = vadd.f32 %v230, %v419
        %421 = vmatmul.bf16.gmra.mxu0 %v342
        %v422 = vpop.f32.mrf.mxu0
        %v423 = vadd.f32 %v230, %v422
        %v424 = vpop.f32.mrf.mxu0
        %v425 = vadd.f32 %v230, %v424
        %426 = vmatmul.bf16.gmra.mxu0 %v345
        %v427 = vpop.f32.mrf.mxu0
        %v428 = vadd.f32 %v230, %v427
        %v429 = vpop.f32.mrf.mxu0
        %v430 = vadd.f32 %v230, %v429
        %431 = vmatmul.bf16.gmra.mxu0 %v348
        %v432 = vpop.f32.mrf.mxu0
        %v433 = vadd.f32 %v230, %v432
        %v434 = vpop.f32.mrf.mxu0
        %v435 = vadd.f32 %v230, %v434
        %436 = vmatmul.bf16.gmra.mxu0 %v351
        %v437 = vpop.f32.mrf.mxu0
        %v438 = vadd.f32 %v230, %v437
        %v439 = vpop.f32.mrf.mxu0
        %v440 = vadd.f32 %v230, %v439
        %441 = vmatmul.bf16.gmra.mxu0 %v354
        %v442 = vpop.f32.mrf.mxu0
        %v443 = vadd.f32 %v230, %v442
        %v444 = vpop.f32.mrf.mxu0
        %445 = vdwg.mxu0
        %v446 = vmax.f32 %v373, 0.0
        %v447 = vmax.f32 %v375, 0.0
        %v448 = vmax.f32 %v378, 0.0
        %v449 = vmax.f32 %v380, 0.0
        %v450 = vmax.f32 %v383, 0.0
        %v451 = vmax.f32 %v385, 0.0
        %v452 = vmax.f32 %v388, 0.0
        %v453 = vmax.f32 %v390, 0.0
        %v454 = vmax.f32 %v393, 0.0
        %v455 = vmax.f32 %v395, 0.0
        %v456 = vmax.f32 %v398, 0.0
        %v457 = vmax.f32 %v400, 0.0
        %v458 = vmax.f32 %v403, 0.0
        %v459 = vmax.f32 %v405, 0.0
        %v460 = vmax.f32 %v408, 0.0
        %v461 = vmax.f32 %v410, 0.0
        %v462 = vmax.f32 %v413, 0.0
        %v463 = vmax.f32 %v415, 0.0
        %v464 = vmax.f32 %v418, 0.0
        %v465 = vmax.f32 %v420, 0.0
        %v466 = vmax.f32 %v423, 0.0
        %v467 = vmax.f32 %v425, 0.0
        %v468 = vmax.f32 %v428, 0.0
        %v469 = vmax.f32 %v430, 0.0
        %v470 = vmax.f32 %v433, 0.0
        %v471 = vmax.f32 %v435, 0.0
        %v472 = vmax.f32 %v438, 0.0
        %v473 = vmax.f32 %v440, 0.0
        %v474 = vmax.f32 %v443, 0.0
        %v475 = vpack.c.bf16 %v446, %v446
        %v476 = vpack.c.bf16 %v447, %v447
        %v477 = vpack.c.bf16 %v448, %v448
        %v478 = vpack.c.bf16 %v449, %v449
        %v479 = vpack.c.bf16 %v450, %v450
        %v480 = vpack.c.bf16 %v451, %v451
        %v481 = vpack.c.bf16 %v452, %v452
        %v482 = vpack.c.bf16 %v453, %v453
        %v483 = vpack.c.bf16 %v454, %v454
        %v484 = vpack.c.bf16 %v455, %v455
        %v485 = vpack.c.bf16 %v456, %v456
        %v486 = vpack.c.bf16 %v457, %v457
        %v487 = vpack.c.bf16 %v458, %v458
        %v488 = vpack.c.bf16 %v459, %v459
        %v489 = vpack.c.bf16 %v460, %v460
        %v490 = vpack.c.bf16 %v461, %v461
        %v491 = vpack.c.bf16 %v462, %v462
        %v492 = vpack.c.bf16 %v463, %v463
        %v493 = vpack.c.bf16 %v464, %v464
        %v494 = vpack.c.bf16 %v465, %v465
        %v495 = vpack.c.bf16 %v466, %v466
        %v496 = vpack.c.bf16 %v467, %v467
        %v497 = vpack.c.bf16 %v468, %v468
        %v498 = vpack.c.bf16 %v469, %v469
        %v499 = vpack.c.bf16 %v470, %v470
        %v500 = vpack.c.bf16 %v471, %v471
        %v501 = vpack.c.bf16 %v472, %v472
        %v502 = vpack.c.bf16 %v473, %v473
        %v503 = vpack.c.bf16 %v474, %v474
        %504 = vst [vmem:[%s176] sm:$0xf] %v475
        %505 = vst [vmem:[%s176 + $0x4] sm:$0xf] %v476
        %506 = vst [vmem:[%s176 + $0x8] sm:$0xf] %v477
        %507 = vst [vmem:[%s176 + $0xc] sm:$0xf] %v478
        %508 = vst [vmem:[%s176 + $0x10] sm:$0xf] %v479
        %509 = vst [vmem:[%s176 + $0x14] sm:$0xf] %v480
        %510 = vst [vmem:[%s176 + $0x18] sm:$0xf] %v481
        %511 = vst [vmem:[%s176 + $0x1c] sm:$0xf] %v482
        %512 = vst [vmem:[%s176 + $0x20] sm:$0xf] %v483
        %513 = vst [vmem:[%s176 + $0x24] sm:$0xf] %v484
        %514 = vst [vmem:[%s176 + $0x28] sm:$0xf] %v485
        %515 = vst [vmem:[%s176 + $0x2c] sm:$0xf] %v486
        %516 = vst [vmem:[%s176 + $0x30] sm:$0xf] %v487
        %517 = vst [vmem:[%s176 + $0x34] sm:$0xf] %v488
        %518 = vst [vmem:[%s176 + $0x38] sm:$0xf] %v489
        %519 = vst [vmem:[%s176 + $0x3c] sm:$0xf] %v490
        %520 = vst [vmem:[%s176 + $0x40] sm:$0xf] %v491
        %521 = vst [vmem:[%s176 + $0x44] sm:$0xf] %v492
        %522 = vst [vmem:[%s176 + $0x48] sm:$0xf] %v493
        %523 = vst [vmem:[%s176 + $0x4c] sm:$0xf] %v494
        %524 = vst [vmem:[%s176 + $0x50] sm:$0xf] %v495
        %525 = vst [vmem:[%s176 + $0x54] sm:$0xf] %v496
        %526 = vst [vmem:[%s176 + $0x58] sm:$0xf] %v497
        %527 = vst [vmem:[%s176 + $0x5c] sm:$0xf] %v498
        %528 = vst [vmem:[%s176 + $0x60] sm:$0xf] %v499
        %529 = vst [vmem:[%s176 + $0x64] sm:$0xf] %v500
        %530 = vst [vmem:[%s176 + $0x68] sm:$0xf] %v501
        %531 = vst [vmem:[%s176 + $0x6c] sm:$0xf] %v502
        %532 = vst [vmem:[%s176 + $0x70] sm:$0xf] %v503
        %s533 = sand.u32 %s93, 1
        %s534 = scalar_lea.sflag [#allocation3], %s533
        %s535 = sand.u32 %s93, 1
        %s536 = smul.addr %s535, 116
        %s537 = scalar_lea.vmem [#allocation2], %s536
        // Predicated region
        $region33: #{tpu_custom_call.1} parent=31 // pred_check
          %p538 = pneg %p103
        $region34: #{tpu_custom_call.1} parent=31 // pred_check_branch
          %540 = sbr.rel (%p538) target = $region36
        $region35: #{tpu_custom_call.1} parent=31 // pred_region
          %s541 = smul.u32 29, %s17
          %s542 = ssub.s32 57, %s541
          %p543 = scmp.lt.s32.totalorder %s542, 29
          %s544 = scalar_select %p543, %s542, 29
          %s545 = smul.u32 4, %s544
          %s546 = ssub.s32 116, %s545
          %s547 = sshll.u32 %s546, 4
          %548 = vsyncadd %s534, %s547
          %p549 = scmp.ne.s32.totalorder 0, %s545
          %s550 = smul.addr %s541, 4
          %s551 = scalar_lea.hbm %s3, %s550
          %s552 = smul.u32 4, %s544
          %s553 = sshll.u32 %s537, 4
          %s554 = int_to_ptr.vmem [resolvable:$true] %s553
          %s555 = sshll.u32 %s551, 4
          %s556 = int_to_ptr.hbm [resolvable:$true] %s555
          %s557 = sshll.u32 %s552, 4
          %561 = dma.vmem_to_hbm [thread:$0]  (%p549), %s554, %s557, %s556, %s534, 64, 64, 4
        $region36: #{tpu_custom_call.1} parent=31 // pred_fallthru
          _
      $region32: #{tpu_custom_call.1} parent=5 // pred_fallthru
        _
      %p562 = scmp.le.s32.totalorder 2, %s12
      // Predicated region
      $region37: #{tpu_custom_call.1} parent=5 // pred_check
        %p563 = pneg %p562
      $region38: #{tpu_custom_call.1} parent=5 // pred_check_branch
        %565 = sbr.rel (%p563) target = $region40
      $region39: #{tpu_custom_call.1} parent=5 // pred_region
        %s566 = ssub.s32 %s12, 2
        // Predicated region
        $region41: #{tpu_custom_call.1} parent=39 // pred_check
          %p567 = pneg %p109
        $region42: #{tpu_custom_call.1} parent=39 // pred_check_branch
          %569 = sbr.rel (%p567) target = $region44
        $region43: #{tpu_custom_call.1} parent=39 // pred_region
          %s570 = sand.u32 %s94, 1
          %s571 = scalar_lea.sflag [#allocation3], %s570
          %s572 = sand.u32 %s94, 1
          %s573 = smul.addr %s572, 116
          %s574 = scalar_lea.vmem [#allocation2], %s573
          %576 = dma.done %s571, 1856
        $region44: #{tpu_custom_call.1} parent=39 // pred_fallthru
          _
      $region40: #{tpu_custom_call.1} parent=5 // pred_fallthru
        _
    $region6: #{tpu_custom_call.1} parent=1 // loop_footer
      %s16 = sadd.s32 1, %s12
    $region7: #{tpu_custom_call.1} parent=1 // loop_footer_branch
      %11 = sbr.rel target = $region3
    $region8: #{tpu_custom_call.1} parent=1 // loop_exit
      _
    %577 = vsyncpa [#allocation3], 1
    %s578 = scalar_lea.sflag [#allocation3], 1
    %579 = vsyncpa %s578, 1

</llo_original>
